<compile_context>
chip_gen: v6e
topology: v6e:2x2x1
jax: 0.10.0
libtpu: 0.0.40
codegen_flags: <defaults>
</compile_context>

<pallas_src>
import functools

import jax
import jax.numpy as jnp
from jax.experimental import pallas as pl
from jax.experimental.pallas import tpu as pltpu


# ----------------------------------------------------------------------------
# Hardware queries (safe fallbacks: assume the smallest VMEM / 1 TensorCore).
# ----------------------------------------------------------------------------
def _tpu_info():
    try:
        return pltpu.get_tpu_info()
    except Exception:
        return None


def _vmem_capacity_bytes():
    info = _tpu_info()
    if info is not None:
        v = getattr(info, "vmem_capacity_bytes", None)
        if isinstance(v, int) and v > 0:
            return v
    return 64 * 1024 * 1024  # conservative (v7x-sized) fallback


def _num_tensorcores():
    candidates = [_tpu_info()]
    try:
        devs = jax.devices()
        if devs:
            candidates.append(devs[0])
    except Exception:
        pass
    for obj in candidates:
        if obj is None:
            continue
        for name in ("num_cores", "core_count", "num_tensorcores",
                     "tensorcore_count", "cores_per_chip"):
            v = getattr(obj, name, None)
            if isinstance(v, int) and v >= 1:
                return v
    return 1  # safe default: v5e/v6e behaviour (no redundant second slice)


# ----------------------------------------------------------------------------
# Kernel
# ----------------------------------------------------------------------------
def _soft_ce_kernel(x_ref, t_ref, o_ref, *, tile_n, steps, n_rows,
                    num_blocks, masked):
    p = pl.program_id(0)   # slice (one per TensorCore when num_par == 2)
    i = pl.program_id(1)   # reduction step within the slice

    @pl.when(i == 0)
    def _init():
        o_ref[...] = jnp.zeros_like(o_ref)

    def body(mask_rows):
        x = x_ref[...].astype(jnp.float32)          # (tile_n, C)
        t = t_ref[...].astype(jnp.float32)          # (tile_n, C)

        if mask_rows:
            # Row-validity mask for the tail block and for redundant
            # (clamped) grid steps.  SELECT, not arithmetic masking, so OOB
            # garbage (possibly NaN) cannot propagate.
            row_start = (p * steps + i) * tile_n
            row_ids = row_start + jax.lax.broadcasted_iota(
                jnp.int32, (tile_n, 1), 0)
            valid = row_ids < n_rows
            x = jnp.where(valid, x, 0.0)
            t = jnp.where(valid, t, 0.0)

        # Numerically stable -log_softmax folded with the soft targets:
        #   contrib = t * (logsumexp(x - m) - (x - m)) == t * (-log_softmax(x))
        m = jnp.max(x, axis=-1, keepdims=True)
        z = x - m
        lse = jnp.log(jnp.sum(jnp.exp(z), axis=-1, keepdims=True))
        contrib = t * (lse - z)                     # (tile_n, C)

        # Fold to the vreg-shaped output-resident accumulator:
        # (tile_n, C) -> (tile_n//8, 8, C) -> (8, C).  Pure VPU adds.
        o_ref[0] += contrib.reshape(tile_n // 8, 8, contrib.shape[-1]).sum(axis=0)

    if not masked:
        # Compile-time fast path: no iota, no selects, no branch.
        body(False)
    else:
        blk = p * steps + i
        # Only the last real block holds tail rows; redundant clamped steps
        # (blk >= num_blocks) are fully masked by the same path.
        @pl.when(blk < num_blocks - 1)
        def _hot():
            body(False)

        @pl.when(blk >= num_blocks - 1)
        def _tail():
            body(True)


# ----------------------------------------------------------------------------
# Tile sizing
# ----------------------------------------------------------------------------
def _pick_tile_n(n_rows, n_cols, x_itemsize, t_itemsize, work_budget):
    """Largest batch tile whose full working set fits the VMEM budget.

    Per-row cost = 2 double-buffered input operands (both itemsizes) plus
    ~4 live f32 (tile_n, C) temporaries (x/t upcasts, exp(z), contrib).
    """
    per_row_inputs = 2 * (x_itemsize + t_itemsize) * n_cols
    per_row_temps = 4 * 4 * n_cols
    per_row = per_row_inputs + per_row_temps

    # Stream >= ~8 MiB of operand bytes per grid step so the ~0.35 us/step
    # pipeline overhead stays well under 5-10% of the DMA time.
    stream_target = 8 * 1024 * 1024
    rows_for_stream = stream_target // max(1, (x_itemsize + t_itemsize) * n_cols)

    t = min(work_budget // per_row, max(4096, rows_for_stream))
    t = max(16, (t // 16) * 16)                  # multiple of 16 (bf16 sublanes)
    # No point making the tile larger than the (16-padded) batch itself.
    t = min(t, max(16, -(-n_rows // 16) * 16))
    return int(t)


# ----------------------------------------------------------------------------
# Wrapper
# ----------------------------------------------------------------------------
def soft_cross_entropy(inputs, target, *, tile_n=None):
    """inputs, target: (N, C). Returns scalar f32 loss = sum(-log_softmax(x)*t)/N.

    Prefer bf16 operands at the call boundary: the kernel streams them as-is
    (halving HBM bytes) and upcasts to f32 internally for the math.
    """
    N, C = inputs.shape
    assert target.shape == (N, C)

    vmem_cap = _vmem_capacity_bytes()
    if vmem_cap >= 96 * 1024 * 1024:             # v5e / v6e: 128 MiB VMEM
        work_budget = 72 * 1024 * 1024
        vmem_limit = 96 * 1024 * 1024
    else:                                        # v7x (64 MiB) or unknown
        work_budget = 34 * 1024 * 1024
        vmem_limit = 46 * 1024 * 1024

    if tile_n is None:
        tile_n = _pick_tile_n(
            N, C,
            jnp.dtype(inputs.dtype).itemsize,
            jnp.dtype(target.dtype).itemsize,
            work_budget)
    assert tile_n % 16 == 0

    num_blocks = pl.cdiv(N, tile_n)

    # One grid slice per TensorCore; skip the split on 1-TC chips, and avoid a
    # redundant clamped tile unless the grid is long enough that its wasted
    # DMA is negligible.
    cores = _num_tensorcores()
    num_par = 2 if (cores >= 2 and num_blocks >= 2
                    and (num_blocks % 2 == 0 or num_blocks >= 8)) else 1
    steps = pl.cdiv(num_blocks, num_par)

    # Compile-time: do any grid steps need row masking at all?
    masked = (N % tile_n != 0) or (num_par * steps != num_blocks)

    def in_map(p, i):
        blk = p * steps + i
        return (jnp.minimum(blk, num_blocks - 1), 0)   # clamp redundant tiles

    kernel = functools.partial(
        _soft_ce_kernel, tile_n=tile_n, steps=steps, n_rows=N,
        num_blocks=num_blocks, masked=masked)

    if num_par >= 2:
        # Guarantee the leading axis is sharded across TensorCores.
        lead_sem = getattr(pltpu, "CORE_PARALLEL", "parallel")
    else:
        lead_sem = "arbitrary"

    partials = pl.pallas_call(
        kernel,
        out_shape=jax.ShapeDtypeStruct((num_par, 8, C), jnp.float32),
        grid_spec=pltpu.PrefetchScalarGridSpec(
            num_scalar_prefetch=0,
            grid=(num_par, steps),
            in_specs=[
                pl.BlockSpec((tile_n, C), in_map),
                pl.BlockSpec((tile_n, C), in_map),
            ],
            out_specs=pl.BlockSpec((1, 8, C), lambda p, i: (p, 0, 0)),
        ),
        compiler_params=pltpu.CompilerParams(
            dimension_semantics=(lead_sem, "arbitrary"),
            vmem_limit_bytes=vmem_limit,
        ),
    )(inputs, target)

    # Tiny final cross-lane reduce + divide, once, outside the hot loop.
    return jnp.sum(partials) / jnp.float32(N)


# ----------------------------------------------------------------------------
# Reference + tests
# ----------------------------------------------------------------------------
def _reference(inputs, target):
    x = inputs.astype(jnp.float32)
    t = target.astype(jnp.float32)
    nll = -jax.nn.log_softmax(x, axis=1)
    return jnp.sum(nll * t) / x.shape[0]


if __name__ == "__main__":
    key = jax.random.PRNGKey(0)

    # --- main test: small shapes consistent with the module -----------------
    k1, k2 = jax.random.split(key)
    N, C = 16, 128
    inputs = jax.random.normal(k1, (N, C), dtype=jnp.float32)
    target = jax.nn.softmax(jax.random.normal(k2, (N, C), dtype=jnp.float32), axis=1)

    loss = jax.block_until_ready(soft_cross_entropy(inputs, target))
    ref = jax.block_until_ready(_reference(inputs, target))
    assert jnp.allclose(loss, ref, rtol=1e-4, atol=1e-5), (loss, ref)

    # --- multi-step unmasked accumulation path (forced small tile) ----------
    k3, k4 = jax.random.split(k1)
    x2 = jax.random.normal(k3, (512, 128), dtype=jnp.float32)
    t2 = jax.nn.softmax(jax.random.normal(k4, (512, 128), dtype=jnp.float32), axis=1)
    loss2 = jax.block_until_ready(soft_cross_entropy(x2, t2, tile_n=64))
    ref2 = jax.block_until_ready(_reference(x2, t2))
    assert jnp.allclose(loss2, ref2, rtol=1e-4, atol=1e-5), (loss2, ref2)

    # --- tail-masked path: N not a multiple of the tile ---------------------
    k5, k6 = jax.random.split(k2)
    x3 = jax.random.normal(k5, (40, 128), dtype=jnp.float32)
    t3 = jax.nn.softmax(jax.random.normal(k6, (40, 128), dtype=jnp.float32), axis=1)
    loss3 = jax.block_until_ready(soft_cross_entropy(x3, t3, tile_n=16))
    ref3 = jax.block_until_ready(_reference(x3, t3))
    assert jnp.allclose(loss3, ref3, rtol=1e-4, atol=1e-5), (loss3, ref3)

    # --- bf16 operands through the DMA (preferred caller contract) ----------
    k7, k8 = jax.random.split(k3)
    x4 = jax.random.normal(k7, (64, 128), dtype=jnp.float32).astype(jnp.bfloat16)
    t4 = jax.nn.softmax(
        jax.random.normal(k8, (64, 128), dtype=jnp.float32), axis=1
    ).astype(jnp.bfloat16)
    loss4 = jax.block_until_ready(soft_cross_entropy(x4, t4))
    ref4 = jax.block_until_ready(_reference(x4, t4))
    assert jnp.allclose(loss4, ref4, rtol=1e-4, atol=1e-4), (loss4, ref4)

    print("KERNEL_OK")
</pallas_src>

<mosaic_0001>
module attributes {stable_mosaic.version = 11 : i64} {
  func.func @_soft_ce_kernel(%arg0: i32, %arg1: i32, %arg2: memref<16x128xf32, #tpu.memory_space<vmem>>, %arg3: memref<16x128xf32, #tpu.memory_space<vmem>>, %arg4: memref<1x8x128xf32, #tpu.memory_space<vmem>>) attributes {dimension_semantics = [#tpu.dimension_semantics<arbitrary>, #tpu.dimension_semantics<arbitrary>], iteration_bounds = array<i64: 1, 1>, scalar_prefetch = 0 : i64, scratch_operands = 0 : i64, tpu.core_type = #tpu.core_type<tc>, window_params = [{transform_indices = @transform_0, window_bounds = array<i64: 16, 128>}, {transform_indices = @transform_1, window_bounds = array<i64: 16, 128>}, {transform_indices = @transform_2, window_bounds = array<i64: 1, 8, 128>}]} {
    %c0_i32 = arith.constant 0 : i32
    %0 = arith.cmpi eq, %arg1, %c0_i32 : i32
    %1 = arith.extui %0 : i1 to i32
    %c0_i32_0 = arith.constant 0 : i32
    %2 = arith.cmpi ne, %1, %c0_i32_0 : i32
    scf.if %2 {
      %cst_12 = arith.constant 0.000000e+00 : f32
      %24 = vector.broadcast %cst_12 : f32 to vector<1x8x128xf32>
      %c0_13 = arith.constant 0 : index
      %c0_14 = arith.constant 0 : index
      %c0_15 = arith.constant 0 : index
      %25 = vector.load %arg4[%c0_13, %c0_14, %c0_15] : memref<1x8x128xf32, #tpu.memory_space<vmem>>, vector<1x8x128xf32>
      tpu.vector_store %arg4[%c0_13, %c0_14, %c0_15], %24 {strides = array<i32>} : memref<1x8x128xf32, #tpu.memory_space<vmem>>, vector<1x8x128xf32>,
    } else {
    }
    %c0 = arith.constant 0 : index
    %c0_1 = arith.constant 0 : index
    %3 = vector.load %arg2[%c0, %c0_1] : memref<16x128xf32, #tpu.memory_space<vmem>>, vector<16x128xf32>
    %c0_2 = arith.constant 0 : index
    %c0_3 = arith.constant 0 : index
    %4 = vector.load %arg3[%c0_2, %c0_3] : memref<16x128xf32, #tpu.memory_space<vmem>>, vector<16x128xf32>
    %cst = arith.constant dense<0xFF800000> : vector<16xf32>
    %5 = vector.multi_reduction <maximumf>, %3, %cst [1] : vector<16x128xf32> to vector<16xf32>
    %6 = vector.shape_cast %5 : vector<16xf32> to vector<16x1xf32>
    %7 = vector.broadcast %6 : vector<16x1xf32> to vector<16x128xf32>
    %8 = arith.subf %3, %7 : vector<16x128xf32>
    %9 = math.exp %8 : vector<16x128xf32>
    %cst_4 = arith.constant dense<0.000000e+00> : vector<16xf32>
    %10 = vector.multi_reduction <add>, %9, %cst_4 [1] : vector<16x128xf32> to vector<16xf32>
    %11 = vector.shape_cast %10 : vector<16xf32> to vector<16x1xf32>
    %12 = math.log %11 : vector<16x1xf32>
    %13 = vector.broadcast %12 : vector<16x1xf32> to vector<16x128xf32>
    %14 = arith.subf %13, %8 : vector<16x128xf32>
    %15 = arith.mulf %4, %14 : vector<16x128xf32>
    %c0_5 = arith.constant 0 : index
    %c0_6 = arith.constant 0 : index
    %c0_7 = arith.constant 0 : index
    %16 = vector.load %arg4[%c0_5, %c0_6, %c0_7] : memref<1x8x128xf32, #tpu.memory_space<vmem>>, vector<1x8x128xf32>
    %17 = vector.shape_cast %16 : vector<1x8x128xf32> to vector<8x128xf32>
    %18 = vector.shape_cast %15 : vector<16x128xf32> to vector<2x8x128xf32>
    %cst_8 = arith.constant dense<0.000000e+00> : vector<8x128xf32>
    %19 = vector.multi_reduction <add>, %18, %cst_8 [0] : vector<2x8x128xf32> to vector<8x128xf32>
    %20 = arith.addf %17, %19 : vector<8x128xf32>
    %c0_9 = arith.constant 0 : index
    %c0_10 = arith.constant 0 : index
    %c0_11 = arith.constant 0 : index
    %21 = vector.load %arg4[%c0_9, %c0_10, %c0_11] : memref<1x8x128xf32, #tpu.memory_space<vmem>>, vector<1x8x128xf32>
    %22 = vector.shape_cast %21 : vector<1x8x128xf32> to vector<8x128xf32>
    %23 = vector.shape_cast %20 : vector<8x128xf32> to vector<1x8x128xf32>
    tpu.vector_store %arg4[%c0_9, %c0_10, %c0_11], %23 {strides = array<i32>} : memref<1x8x128xf32, #tpu.memory_space<vmem>>, vector<1x8x128xf32>,
    return
  }
  func.func @transform_0(%arg0: i32, %arg1: i32) -> (i32, i32) {
    %c1_i32 = arith.constant 1 : i32
    %0 = arith.muli %arg0, %c1_i32 : i32
    %1 = arith.addi %0, %arg1 : i32
    %c0_i32 = arith.constant 0 : i32
    %2 = arith.minsi %1, %c0_i32 : i32
    %c0_i32_0 = arith.constant 0 : i32
    %c0_i32_1 = arith.constant 0 : i32
    return %2, %c0_i32_0 : i32, i32
  }
  func.func @transform_1(%arg0: i32, %arg1: i32) -> (i32, i32) {
    %c1_i32 = arith.constant 1 : i32
    %0 = arith.muli %arg0, %c1_i32 : i32
    %1 = arith.addi %0, %arg1 : i32
    %c0_i32 = arith.constant 0 : i32
    %2 = arith.minsi %1, %c0_i32 : i32
    %c0_i32_0 = arith.constant 0 : i32
    %c0_i32_1 = arith.constant 0 : i32
    return %2, %c0_i32_0 : i32, i32
  }
  func.func @transform_2(%arg0: i32, %arg1: i32) -> (i32, i32, i32) {
    %c0_i32 = arith.constant 0 : i32
    %c0_i32_0 = arith.constant 0 : i32
    %c0_i32_1 = arith.constant 0 : i32
    return %arg0, %c0_i32, %c0_i32_0 : i32, i32, i32
  }
}

</mosaic_0001>

<llo_original>
// kernel: tpu_custom_call.1
$region0: #{tpu_custom_call.1}
  #allocation0 [shape = 'u32[]', space=smem, size = 0x4, offset = 0x4, fixed_abs, tag = 'smem constant byte address 0x4 - core index']
  #allocation1 [shape = 'u32[144,128]{1,0:T(1,128)}', space=vmem, size = 0x12000, scoped, tag = 'internal scratch']
  %s0 = inlined_call_operand.hbm [shape: f32[16,128], index: 0, kind: input, shape index: {}]
  %s1 = inlined_call_operand.hbm [shape: f32[16,128], index: 1, kind: input, shape index: {}]
  %s2 = inlined_call_operand.hbm [shape: f32[1,8,128], index: 2, kind: output, shape index: {}]
  %s3 = sld [smem:[#allocation0]]
  $region30: #{tpu_custom_call.1} parent=0
    _
  %s5 = ssub.s32 1, %s3
  %s6 = scalar_select 0, %s5, %s3
  $region1: #{tpu_custom_call.1} parent=0
    #allocation2 [shape = 'u8[8192]{0}', space=vmem, size = 0x2000, scoped, tag = 'input window, operand 0, single buffered']
    #allocation3 [shape = 's32[1]{0}', space=sflag, size = 0x4, scoped, tag = 'scoped memory for tpu_custom_call.1']
    #allocation4 [shape = 's32[1]{0}', space=sflag, size = 0x4, scoped, tag = 'scoped memory for tpu_custom_call.1']
    #allocation5 [shape = 'u8[8192]{0}', space=vmem, size = 0x2000, scoped, tag = 'input window, operand 1, single buffered']
    #allocation6 [shape = 's32[1]{0}', space=sflag, size = 0x4, scoped, tag = 'scoped memory for tpu_custom_call.1']
    #allocation7 [shape = 'u8[4096]{0}', space=vmem, size = 0x1000, scoped, tag = 'output window, operand 0, single buffered']
    %7 = vsyncpa [#allocation3], 0
    %8 = vsyncpa [#allocation6], 0
    %9 = vsyncpa [#allocation4], 0
    // Predicated region
    $region2: #{tpu_custom_call.1} parent=1 // pred_check
      _
    $region3: #{tpu_custom_call.1} parent=1 // pred_check_branch
      %11 = sbr.rel (0) target = $region5
    $region4: #{tpu_custom_call.1} parent=1 // pred_region
      %s12 = sadd.s32 0, 0
      %p13 = scmp.lt.s32.totalorder %s12, 0
      %s14 = scalar_select %p13, %s12, 0
      %s15 = smul.u32 2, %s14
      %s17 = ssub.s32 256, 256
      %18 = vsyncadd [#allocation3], %s17
      %s19 = smul.addr %s15, 128
      %s20 = scalar_lea.hbm %s0, %s19
      %s21 = sshll.u32 [#allocation2], 4
      %s22 = int_to_ptr.vmem [resolvable:$true] %s21
      %27 = dma.hbm_to_vmem [thread:$0]  %s20, 256, %s22, [#allocation3], 128, 128, 8
    $region5: #{tpu_custom_call.1} parent=1 // pred_fallthru
      _
    // Predicated region
    $region6: #{tpu_custom_call.1} parent=1 // pred_check
      _
    $region7: #{tpu_custom_call.1} parent=1 // pred_check_branch
      %29 = sbr.rel (0) target = $region9
    $region8: #{tpu_custom_call.1} parent=1 // pred_region
      %s30 = sadd.s32 0, 0
      %p31 = scmp.lt.s32.totalorder %s30, 0
      %s32 = scalar_select %p31, %s30, 0
      %s33 = smul.u32 2, %s32
      %s35 = ssub.s32 256, 256
      %36 = vsyncadd [#allocation6], %s35
      %s37 = smul.addr %s33, 128
      %s38 = scalar_lea.hbm %s1, %s37
      %s39 = sshll.u32 [#allocation5], 4
      %s40 = int_to_ptr.vmem [resolvable:$true] %s39
      %45 = dma.hbm_to_vmem [thread:$0]  %s38, 256, %s40, [#allocation6], 128, 128, 8
    $region9: #{tpu_custom_call.1} parent=1 // pred_fallthru
      _
    // Predicated region
    $region10: #{tpu_custom_call.1} parent=1 // pred_check
      _
    $region11: #{tpu_custom_call.1} parent=1 // pred_check_branch
      %47 = sbr.rel (0) target = $region13
    $region12: #{tpu_custom_call.1} parent=1 // pred_region
      %48 = dma.done [#allocation3], 256
    $region13: #{tpu_custom_call.1} parent=1 // pred_fallthru
      _
    // Predicated region
    $region14: #{tpu_custom_call.1} parent=1 // pred_check
      _
    $region15: #{tpu_custom_call.1} parent=1 // pred_check_branch
      %50 = sbr.rel (0) target = $region17
    $region16: #{tpu_custom_call.1} parent=1 // pred_region
      %51 = dma.done [#allocation6], 256
    $region17: #{tpu_custom_call.1} parent=1 // pred_fallthru
      _
    %s52 = sadd.s32 0, 0
    %p53 = scmp.lt.s32.totalorder %s52, 0
    %s54 = scalar_select %p53, %s52, 0
    %s55 = smul.u32 2, %s54
    %s56 = sadd.s32 0, 0
    %p57 = scmp.lt.s32.totalorder %s56, 0
    %s58 = scalar_select %p57, %s56, 0
    %s59 = smul.u32 2, %s58
    %p60 = scmp.eq.s32.totalorder 0, 0
    // Predicated region
    $region18: #{tpu_custom_call.1} parent=1 // pred_check
      %p61 = pneg %p60
    $region19: #{tpu_custom_call.1} parent=1 // pred_check_branch
      %63 = sbr.rel (%p61) target = $region21
    $region20: #{tpu_custom_call.1} parent=1 // pred_region
      %64 = vst [vmem:[#allocation7] sm:$0xff] 0.0
    $region21: #{tpu_custom_call.1} parent=1 // pred_fallthru
      _
    %v65 = vld [vmem:[#allocation2] sm:$0xff]
    %v66 = vld [vmem:[#allocation2 + $0x8] sm:$0xff]
    %v67 = vld [vmem:[#allocation5] sm:$0xff]
    %v68 = vld [vmem:[#allocation5 + $0x8] sm:$0xff]
    %69 = vmax.xlane.f32.xlu0 %v65
    %v70 = vpop.xlane.xlu0 %69
    %71 = vmax.xlane.f32.xlu0 %v66
    %v72 = vpop.xlane.xlu0 %71
    %v73 = vsub.f32 %v65, %v70
    %v74 = vsub.f32 %v66, %v72
    %v75 = vmul.f32 %v73, 1.442695
    %v76 = vpow.pop %v75
    %v77 = vmul.f32 %v74, 1.442695
    %v78 = vpow.pop %v77
    %79 = vadd.xlane.f32.xlu0 %v76
    %v80 = vpop.xlane.xlu0 %79
    %81 = vadd.xlane.f32.xlu0 %v78
    %v82 = vpop.xlane.xlu0 %81
    %v83 = vlog2.pop %v80
    %v84 = vmul.f32 %v83, 0.6931472
    %v85 = vlog2.pop %v82
    %v86 = vmul.f32 %v85, 0.6931472
    %v87 = vsub.f32 %v84, %v73
    %v88 = vsub.f32 %v86, %v74
    %v89 = vmul.f32 %v67, %v87
    %v90 = vmul.f32 %v68, %v88
    %v91 = vld [vmem:[#allocation7] sm:$0xff]
    %v92 = vadd.f32 %v89, %v90
    %v93 = vadd.f32 %v91, %v92
    %94 = vst [vmem:[#allocation7] sm:$0xff] %v93
    // Predicated region
    $region22: #{tpu_custom_call.1} parent=1 // pred_check
      _
    $region23: #{tpu_custom_call.1} parent=1 // pred_check_branch
      %96 = sbr.rel (0) target = $region25
    $region24: #{tpu_custom_call.1} parent=1 // pred_region
      %s98 = ssub.s32 128, 128
      %99 = vsyncadd [#allocation4], %s98
      %s101 = sshll.u32 [#allocation7], 4
      %s102 = int_to_ptr.vmem [resolvable:$true] %s101
      %104 = dma.vmem_to_hbm [thread:$0]  %s102, 128, %s2, [#allocation4]
    $region25: #{tpu_custom_call.1} parent=1 // pred_fallthru
      _
    // Predicated region
    $region26: #{tpu_custom_call.1} parent=1 // pred_check
      _
    $region27: #{tpu_custom_call.1} parent=1 // pred_check_branch
      %106 = sbr.rel (0) target = $region29
    $region28: #{tpu_custom_call.1} parent=1 // pred_region
      %107 = dma.done [#allocation4], 128
    $region29: #{tpu_custom_call.1} parent=1 // pred_fallthru
      _
    %108 = vsyncpa [#allocation3], 1
    %109 = vsyncpa [#allocation6], 1
    %110 = vsyncpa [#allocation4], 1

</llo_original>
